<compile_context>
chip_gen: v7x
topology: tpu7x:2x2x1
jax: 0.10.0
libtpu: 0.0.40
codegen_flags: <defaults>
</compile_context>

<pallas_src>
import jax
import jax.numpy as jnp
from jax.experimental import pallas as pl
from jax.experimental.pallas import tpu as pltpu

# ---------------- model configuration ----------------
IN_DIM = 128           # config['in_dim']
HID_DIMS = (64, 32)    # config['hid_dims']
OUT_DIM = 16           # config['out_dim']
DROPOUT = 0.1          # config['dropout'] -> identity in eval
MODEL_TYPE = "mlp"     # config['model_type'] (unused in forward)


def _chip_config():
    """Per-generation (row-tile target, vmem limit, dimension semantics)."""
    try:
        kind = jax.devices()[0].device_kind.lower()
    except Exception:
        kind = ""
    if "v7" in kind:
        # v7x: ~3.2 TB/s HBM wants the biggest steps; 64 MiB physical VMEM.
        return 8192, 48 << 20, (pltpu.CORE_PARALLEL,)
    if "v5 lite" in kind or "v5e" in kind:
        # v5e: 16 MiB scoped-VMEM default, ~820 GB/s HBM -> TM=4096 is near roofline.
        return 4096, 16 << 20, ("parallel",)
    # v6e (and other 128-MiB-VMEM chips): big tiles amortize the ~0.35 us/step cost.
    return 8192, 40 << 20, ("parallel",)


# ---------------------------------- kernel ----------------------------------
def classifier_kernel(x_ref, wh0_ref, bh0_ref, wh1_ref, bh1_ref, wf_ref, bf_ref, out_ref):
    # hidden layer 0: ReLU(x @ W0 + b0)  (bf16 MXU inputs, f32 accumulation)
    x = x_ref[...].astype(jnp.bfloat16)
    h = jnp.dot(x, wh0_ref[...], preferred_element_type=jnp.float32) + bh0_ref[...]
    h = jnp.maximum(h, 0.0)
    # hidden layer 1: ReLU(h @ W1 + b1)
    h = jnp.dot(h.astype(jnp.bfloat16), wh1_ref[...],
                preferred_element_type=jnp.float32) + bh1_ref[...]
    h = jnp.maximum(h, 0.0)
    # dropout = identity (eval), final Linear
    out_ref[...] = jnp.dot(h.astype(jnp.bfloat16), wf_ref[...],
                           preferred_element_type=jnp.float32) + bf_ref[...]


@jax.jit
def classifier_forward(params, x):
    # 3-D "ensemble" input: flatten models dim into rows (pure reshape in the wrapper)
    ensemble = (x.ndim == 3)
    if ensemble:
        b, t, m = x.shape
        x = x.reshape(b * t, m)

    rows, in_dim = x.shape

    tm_target, vmem_limit, dim_sem = _chip_config()
    rows8 = ((rows + 7) // 8) * 8          # keep sublane (8) divisibility for the block
    tm = min(tm_target, rows8)             # never allocate a tile bigger than needed
    n_blk = pl.cdiv(rows, tm)              # ragged tail handled by Pallas partial blocks

    # Weight/bias index_maps return the same block on every grid step -> resident in VMEM.
    def resident(shape):
        return pl.BlockSpec(shape, lambda i: (0, 0))

    grid_spec = pltpu.PrefetchScalarGridSpec(
        num_scalar_prefetch=0,
        grid=(n_blk,),
        in_specs=[
            pl.BlockSpec((tm, in_dim), lambda i: (i, 0)),          # x: streamed per row block
            resident((IN_DIM, HID_DIMS[0])), resident((1, HID_DIMS[0])),
            resident((HID_DIMS[0], HID_DIMS[1])), resident((1, HID_DIMS[1])),
            resident((HID_DIMS[1], OUT_DIM)), resident((1, OUT_DIM)),
        ],
        out_specs=pl.BlockSpec((tm, OUT_DIM), lambda i: (i, 0)),
    )

    out = pl.pallas_call(
        classifier_kernel,
        out_shape=jax.ShapeDtypeStruct((rows, OUT_DIM), jnp.float32),  # no pad, no slice
        grid_spec=grid_spec,
        compiler_params=pltpu.CompilerParams(
            dimension_semantics=dim_sem,       # CORE_PARALLEL on v7x, "parallel" elsewhere
            vmem_limit_bytes=vmem_limit,
        ),
    )(x, params["wh0"], params["bh0"], params["wh1"], params["bh1"],
      params["wf"], params["bf"])

    if ensemble:
        if OUT_DIM == 1:
            out = out.reshape(b, t)           # matches PyTorch x.view(batch_size, num_tasks)
        else:
            # TODO(synk): PyTorch's x.view(batch_size, num_tasks) assumes out_dim == 1;
            # keep the per-task output channel when out_dim > 1.
            out = out.reshape(b, t, OUT_DIM)
    return out


# ------------------------------ parameter init ------------------------------
def _linear(key, fan_in, fan_out):
    # nn.Linear default: U(-1/sqrt(fan_in), 1/sqrt(fan_in)) for weight and bias
    kw, kb = jax.random.split(key)
    s = 1.0 / jnp.sqrt(jnp.float32(fan_in))
    w = jax.random.uniform(kw, (fan_in, fan_out), jnp.float32, -s, s)
    b = jax.random.uniform(kb, (1, fan_out), jnp.float32, -s, s)
    # weights stored bf16 (halves weight HBM traffic); biases stay f32 for the epilogue add
    return w.astype(jnp.bfloat16), b


def init_params(key):
    k0, k1, k2 = jax.random.split(key, 3)
    p = {}
    p["wh0"], p["bh0"] = _linear(k0, IN_DIM, HID_DIMS[0])
    p["wh1"], p["bh1"] = _linear(k1, HID_DIMS[0], HID_DIMS[1])
    p["wf"], p["bf"] = _linear(k2, HID_DIMS[1], OUT_DIM)
    return p


# pure-JAX reference mirroring the kernel's bf16 casts (for a tolerance check)
def reference_forward(params, x):
    if x.ndim == 3:
        b, t, m = x.shape
        x2 = x.reshape(b * t, m)
    else:
        x2 = x
    h = x2.astype(jnp.bfloat16).astype(jnp.float32) @ params["wh0"].astype(jnp.float32) + params["bh0"]
    h = jnp.maximum(h, 0.0)
    h = h.astype(jnp.bfloat16).astype(jnp.float32) @ params["wh1"].astype(jnp.float32) + params["bh1"]
    h = jnp.maximum(h, 0.0)
    out = h.astype(jnp.bfloat16).astype(jnp.float32) @ params["wf"].astype(jnp.float32) + params["bf"]
    if x.ndim == 3:
        out = out.reshape(b, t) if OUT_DIM == 1 else out.reshape(b, t, OUT_DIM)
    return out


# ------------------------------------ main ------------------------------------
if __name__ == "__main__":
    key = jax.random.PRNGKey(0)
    k_params, k_x, k_e = jax.random.split(key, 3)

    params = init_params(k_params)

    # 2-D path: rows deliberately NOT a multiple of 8 / TM to exercise the
    # ragged-tail partial-block path that replaced the jnp.pad / out-slice.
    rows = 300
    x = jax.random.normal(k_x, (rows, IN_DIM), jnp.float32)
    out = jax.block_until_ready(classifier_forward(params, x))
    assert out.shape == (rows, OUT_DIM) and out.dtype == jnp.float32
    ref = reference_forward(params, x)
    assert bool(jnp.allclose(out, ref, atol=5e-2, rtol=5e-2)), \
        float(jnp.max(jnp.abs(out - ref)))

    # 3-D ensemble path (flatten -> MLP -> reshape back)
    xe = jax.random.normal(k_e, (2, 5, IN_DIM), jnp.float32)
    oute = jax.block_until_ready(classifier_forward(params, xe))
    assert oute.shape == (2, 5, OUT_DIM)

    print("KERNEL_OK")
</pallas_src>

<mosaic_0001>
module attributes {stable_mosaic.version = 11 : i64} {
  func.func @classifier_kernel(%arg0: i32, %arg1: memref<304x128xf32, #tpu.memory_space<vmem>>, %arg2: memref<128x64xbf16, #tpu.memory_space<vmem>>, %arg3: memref<1x64xf32, #tpu.memory_space<vmem>>, %arg4: memref<64x32xbf16, #tpu.memory_space<vmem>>, %arg5: memref<1x32xf32, #tpu.memory_space<vmem>>, %arg6: memref<32x16xbf16, #tpu.memory_space<vmem>>, %arg7: memref<1x16xf32, #tpu.memory_space<vmem>>, %arg8: memref<304x16xf32, #tpu.memory_space<vmem>>) attributes {dimension_semantics = [#tpu.dimension_semantics<parallel>], iteration_bounds = array<i64: 1>, scalar_prefetch = 0 : i64, scratch_operands = 0 : i64, tpu.core_type = #tpu.core_type<tc>, window_params = [{transform_indices = @transform_0, window_bounds = array<i64: 304, 128>}, {pipeline_mode = #tpu.pipeline_mode<synchronous>, transform_indices = @transform_1, window_bounds = array<i64: 128, 64>}, {pipeline_mode = #tpu.pipeline_mode<synchronous>, transform_indices = @transform_2, window_bounds = array<i64: 1, 64>}, {pipeline_mode = #tpu.pipeline_mode<synchronous>, transform_indices = @transform_3, window_bounds = array<i64: 64, 32>}, {pipeline_mode = #tpu.pipeline_mode<synchronous>, transform_indices = @transform_4, window_bounds = array<i64: 1, 32>}, {pipeline_mode = #tpu.pipeline_mode<synchronous>, transform_indices = @transform_5, window_bounds = array<i64: 32, 16>}, {pipeline_mode = #tpu.pipeline_mode<synchronous>, transform_indices = @transform_6, window_bounds = array<i64: 1, 16>}, {transform_indices = @transform_7, window_bounds = array<i64: 304, 16>}]} {
    %c0 = arith.constant 0 : index
    %c0_0 = arith.constant 0 : index
    %0 = vector.load %arg1[%c0, %c0_0] : memref<304x128xf32, #tpu.memory_space<vmem>>, vector<304x128xf32>
    %1 = arith.truncf %0 : vector<304x128xf32> to vector<304x128xbf16>
    %c0_1 = arith.constant 0 : index
    %c0_2 = arith.constant 0 : index
    %2 = vector.load %arg2[%c0_1, %c0_2] : memref<128x64xbf16, #tpu.memory_space<vmem>>, vector<128x64xbf16>
    %cst = arith.constant dense<0.000000e+00> : vector<304x64xf32>
    %3 = tpu.matmul %1, %2, %cst {dimension_numbers = #tpu.dot_dimension_numbers<[1], [0], [0], [1], [0, 0, 1, 1], [], []>} : vector<304x128xbf16>, vector<128x64xbf16>, vector<304x64xf32> -> vector<304x64xf32>
    %c0_3 = arith.constant 0 : index
    %c0_4 = arith.constant 0 : index
    %4 = vector.load %arg3[%c0_3, %c0_4] : memref<1x64xf32, #tpu.memory_space<vmem>>, vector<1x64xf32>
    %5 = vector.broadcast %4 : vector<1x64xf32> to vector<304x64xf32>
    %6 = arith.addf %3, %5 : vector<304x64xf32>
    %cst_5 = arith.constant 0.000000e+00 : f32
    %7 = vector.broadcast %cst_5 : f32 to vector<304x64xf32>
    %8 = arith.maximumf %6, %7 : vector<304x64xf32>
    %9 = arith.truncf %8 : vector<304x64xf32> to vector<304x64xbf16>
    %c0_6 = arith.constant 0 : index
    %c0_7 = arith.constant 0 : index
    %10 = vector.load %arg4[%c0_6, %c0_7] : memref<64x32xbf16, #tpu.memory_space<vmem>>, vector<64x32xbf16>
    %cst_8 = arith.constant dense<0.000000e+00> : vector<304x32xf32>
    %11 = tpu.matmul %9, %10, %cst_8 {dimension_numbers = #tpu.dot_dimension_numbers<[1], [0], [0], [1], [0, 0, 1, 1], [], []>} : vector<304x64xbf16>, vector<64x32xbf16>, vector<304x32xf32> -> vector<304x32xf32>
    %c0_9 = arith.constant 0 : index
    %c0_10 = arith.constant 0 : index
    %12 = vector.load %arg5[%c0_9, %c0_10] : memref<1x32xf32, #tpu.memory_space<vmem>>, vector<1x32xf32>
    %13 = vector.broadcast %12 : vector<1x32xf32> to vector<304x32xf32>
    %14 = arith.addf %11, %13 : vector<304x32xf32>
    %cst_11 = arith.constant 0.000000e+00 : f32
    %15 = vector.broadcast %cst_11 : f32 to vector<304x32xf32>
    %16 = arith.maximumf %14, %15 : vector<304x32xf32>
    %17 = arith.truncf %16 : vector<304x32xf32> to vector<304x32xbf16>
    %c0_12 = arith.constant 0 : index
    %c0_13 = arith.constant 0 : index
    %18 = vector.load %arg6[%c0_12, %c0_13] : memref<32x16xbf16, #tpu.memory_space<vmem>>, vector<32x16xbf16>
    %cst_14 = arith.constant dense<0.000000e+00> : vector<304x16xf32>
    %19 = tpu.matmul %17, %18, %cst_14 {dimension_numbers = #tpu.dot_dimension_numbers<[1], [0], [0], [1], [0, 0, 1, 1], [], []>} : vector<304x32xbf16>, vector<32x16xbf16>, vector<304x16xf32> -> vector<304x16xf32>
    %c0_15 = arith.constant 0 : index
    %c0_16 = arith.constant 0 : index
    %20 = vector.load %arg7[%c0_15, %c0_16] : memref<1x16xf32, #tpu.memory_space<vmem>>, vector<1x16xf32>
    %21 = vector.broadcast %20 : vector<1x16xf32> to vector<304x16xf32>
    %22 = arith.addf %19, %21 : vector<304x16xf32>
    %c0_17 = arith.constant 0 : index
    %c0_18 = arith.constant 0 : index
    %23 = vector.load %arg8[%c0_17, %c0_18] : memref<304x16xf32, #tpu.memory_space<vmem>>, vector<304x16xf32>
    tpu.vector_store %arg8[%c0_17, %c0_18], %22 {strides = array<i32>} : memref<304x16xf32, #tpu.memory_space<vmem>>, vector<304x16xf32>,
    return
  }
  func.func @transform_0(%arg0: i32) -> (i32, i32) {
    %c0_i32 = arith.constant 0 : i32
    %c0_i32_0 = arith.constant 0 : i32
    return %arg0, %c0_i32 : i32, i32
  }
  func.func @transform_1(%arg0: i32) -> (i32, i32) {
    %c0_i32 = arith.constant 0 : i32
    %c0_i32_0 = arith.constant 0 : i32
    %c0_i32_1 = arith.constant 0 : i32
    return %c0_i32, %c0_i32_0 : i32, i32
  }
  func.func @transform_2(%arg0: i32) -> (i32, i32) {
    %c0_i32 = arith.constant 0 : i32
    %c0_i32_0 = arith.constant 0 : i32
    %c0_i32_1 = arith.constant 0 : i32
    return %c0_i32, %c0_i32_0 : i32, i32
  }
  func.func @transform_3(%arg0: i32) -> (i32, i32) {
    %c0_i32 = arith.constant 0 : i32
    %c0_i32_0 = arith.constant 0 : i32
    %c0_i32_1 = arith.constant 0 : i32
    return %c0_i32, %c0_i32_0 : i32, i32
  }
  func.func @transform_4(%arg0: i32) -> (i32, i32) {
    %c0_i32 = arith.constant 0 : i32
    %c0_i32_0 = arith.constant 0 : i32
    %c0_i32_1 = arith.constant 0 : i32
    return %c0_i32, %c0_i32_0 : i32, i32
  }
  func.func @transform_5(%arg0: i32) -> (i32, i32) {
    %c0_i32 = arith.constant 0 : i32
    %c0_i32_0 = arith.constant 0 : i32
    %c0_i32_1 = arith.constant 0 : i32
    return %c0_i32, %c0_i32_0 : i32, i32
  }
  func.func @transform_6(%arg0: i32) -> (i32, i32) {
    %c0_i32 = arith.constant 0 : i32
    %c0_i32_0 = arith.constant 0 : i32
    %c0_i32_1 = arith.constant 0 : i32
    return %c0_i32, %c0_i32_0 : i32, i32
  }
  func.func @transform_7(%arg0: i32) -> (i32, i32) {
    %c0_i32 = arith.constant 0 : i32
    %c0_i32_0 = arith.constant 0 : i32
    return %arg0, %c0_i32 : i32, i32
  }
}

</mosaic_0001>

<llo_original>
// kernel: classifier_forward.1
$region0: #{classifier_forward.1}
  #allocation0 [shape = 'u32[]', space=smem, size = 0x4, offset = 0x4, fixed_abs, tag = 'smem constant byte address 0x4 - core index']
  #allocation1 [shape = 'u32[144,128]{1,0:T(1,128)}', space=vmem, size = 0x12000, scoped, tag = 'internal scratch']
  %s0 = inlined_call_operand.hbm [shape: f32[300,128], index: 0, kind: input, shape index: {}]
  %s1 = inlined_call_operand.vmem [shape: bf16[128,64], index: 1, kind: input, shape index: {}]
  %s2 = inlined_call_operand.vmem [shape: f32[1,64], index: 2, kind: input, shape index: {}]
  %s3 = inlined_call_operand.vmem [shape: bf16[64,32], index: 3, kind: input, shape index: {}]
  %s4 = inlined_call_operand.vmem [shape: f32[1,32], index: 4, kind: input, shape index: {}]
  %s5 = inlined_call_operand.vmem [shape: bf16[32,16], index: 5, kind: input, shape index: {}]
  %s6 = inlined_call_operand.vmem [shape: f32[1,16], index: 6, kind: input, shape index: {}]
  %s7 = inlined_call_operand.vmem [shape: f32[300,16], index: 7, kind: output, shape index: {}]
  %s8 = sld [smem:[#allocation0]]
  $region42: #{classifier_forward.1} parent=0
    _
  %s10 = ssub.s32 1, %s8
  %s11 = scalar_select 0, %s10, %s8
  $region1: #{classifier_forward.1} parent=0
    #allocation2 [shape = 'u8[155648]{0}', space=vmem, size = 0x26000, scoped, tag = 'input window, operand 0, single buffered']
    #allocation3 [shape = 's32[1]{0}', space=sflag, size = 0x4, scoped, tag = 'scoped memory for classifier_forward.1']
    %12 = vsyncpa [#allocation3], 0
    // Predicated region
    $region2: #{classifier_forward.1} parent=1 // pred_check
      _
    $region3: #{classifier_forward.1} parent=1 // pred_check_branch
      %14 = sbr.rel (0) target = $region5
    $region4: #{classifier_forward.1} parent=1 // pred_region
      %s16 = ssub.s32 4864, 4864
      %17 = vsyncadd [#allocation3], %s16
      %s18 = sshll.u32 [#allocation2], 4
      %s19 = int_to_ptr.vmem [resolvable:$true] %s18
      %24 = dma.hbm_to_vmem [thread:$0]  %s0, 4864, %s19, [#allocation3], 128, 128, 8
    $region5: #{classifier_forward.1} parent=1 // pred_fallthru
      _
    // Predicated region
    $region6: #{classifier_forward.1} parent=1 // pred_check
      _
    $region7: #{classifier_forward.1} parent=1 // pred_check_branch
      %26 = sbr.rel (0) target = $region9
    $region8: #{classifier_forward.1} parent=1 // pred_region
      _
    $region9: #{classifier_forward.1} parent=1 // pred_fallthru
      _
    // Predicated region
    $region10: #{classifier_forward.1} parent=1 // pred_check
      _
    $region11: #{classifier_forward.1} parent=1 // pred_check_branch
      %28 = sbr.rel (0) target = $region13
    $region12: #{classifier_forward.1} parent=1 // pred_region
      _
    $region13: #{classifier_forward.1} parent=1 // pred_fallthru
      _
    // Predicated region
    $region14: #{classifier_forward.1} parent=1 // pred_check
      _
    $region15: #{classifier_forward.1} parent=1 // pred_check_branch
      %30 = sbr.rel (0) target = $region17
    $region16: #{classifier_forward.1} parent=1 // pred_region
      _
    $region17: #{classifier_forward.1} parent=1 // pred_fallthru
      _
    // Predicated region
    $region18: #{classifier_forward.1} parent=1 // pred_check
      _
    $region19: #{classifier_forward.1} parent=1 // pred_check_branch
      %32 = sbr.rel (0) target = $region21
    $region20: #{classifier_forward.1} parent=1 // pred_region
      _
    $region21: #{classifier_forward.1} parent=1 // pred_fallthru
      _
    // Predicated region
    $region22: #{classifier_forward.1} parent=1 // pred_check
      _
    $region23: #{classifier_forward.1} parent=1 // pred_check_branch
      %34 = sbr.rel (0) target = $region25
    $region24: #{classifier_forward.1} parent=1 // pred_region
      _
    $region25: #{classifier_forward.1} parent=1 // pred_fallthru
      _
    // Predicated region
    $region26: #{classifier_forward.1} parent=1 // pred_check
      _
    $region27: #{classifier_forward.1} parent=1 // pred_check_branch
      %36 = sbr.rel (0) target = $region29
    $region28: #{classifier_forward.1} parent=1 // pred_region
      _
    $region29: #{classifier_forward.1} parent=1 // pred_fallthru
      _
    // Predicated region
    $region30: #{classifier_forward.1} parent=1 // pred_check
      _
    $region31: #{classifier_forward.1} parent=1 // pred_check_branch
      %38 = sbr.rel (0) target = $region33
    $region32: #{classifier_forward.1} parent=1 // pred_region
      %39 = dma.done [#allocation3], 4864
    $region33: #{classifier_forward.1} parent=1 // pred_fallthru
      _
    %v41 = vld [vmem:[#allocation2] sm:$0xff]
    %v42 = vld [vmem:[#allocation2 + $0x8] sm:$0xff]
    %v43 = vld [vmem:[#allocation2 + $0x10] sm:$0xff]
    %v44 = vld [vmem:[#allocation2 + $0x18] sm:$0xff]
    %v45 = vld [vmem:[#allocation2 + $0x20] sm:$0xff]
    %v46 = vld [vmem:[#allocation2 + $0x28] sm:$0xff]
    %v47 = vld [vmem:[#allocation2 + $0x30] sm:$0xff]
    %v48 = vld [vmem:[#allocation2 + $0x38] sm:$0xff]
    %v49 = vld [vmem:[#allocation2 + $0x40] sm:$0xff]
    %v50 = vld [vmem:[#allocation2 + $0x48] sm:$0xff]
    %v51 = vld [vmem:[#allocation2 + $0x50] sm:$0xff]
    %v52 = vld [vmem:[#allocation2 + $0x58] sm:$0xff]
    %v53 = vld [vmem:[#allocation2 + $0x60] sm:$0xff]
    %v54 = vld [vmem:[#allocation2 + $0x68] sm:$0xff]
    %v55 = vld [vmem:[#allocation2 + $0x70] sm:$0xff]
    %v56 = vld [vmem:[#allocation2 + $0x78] sm:$0xff]
    %v57 = vld [vmem:[#allocation2 + $0x80] sm:$0xff]
    %v58 = vld [vmem:[#allocation2 + $0x88] sm:$0xff]
    %v59 = vld [vmem:[#allocation2 + $0x90] sm:$0xff]
    %v60 = vld [vmem:[#allocation2 + $0x98] sm:$0xff]
    %v61 = vld [vmem:[#allocation2 + $0xa0] sm:$0xff]
    %v62 = vld [vmem:[#allocation2 + $0xa8] sm:$0xff]
    %v63 = vld [vmem:[#allocation2 + $0xb0] sm:$0xff]
    %v64 = vld [vmem:[#allocation2 + $0xb8] sm:$0xff]
    %v65 = vld [vmem:[#allocation2 + $0xc0] sm:$0xff]
    %v66 = vld [vmem:[#allocation2 + $0xc8] sm:$0xff]
    %v67 = vld [vmem:[#allocation2 + $0xd0] sm:$0xff]
    %v68 = vld [vmem:[#allocation2 + $0xd8] sm:$0xff]
    %v69 = vld [vmem:[#allocation2 + $0xe0] sm:$0xff]
    %v70 = vld [vmem:[#allocation2 + $0xe8] sm:$0xff]
    %v71 = vld [vmem:[#allocation2 + $0xf0] sm:$0xff]
    %v72 = vld [vmem:[#allocation2 + $0xf8] sm:$0xff]
    %v73 = vld [vmem:[#allocation2 + $0x100] sm:$0xff]
    %v74 = vld [vmem:[#allocation2 + $0x108] sm:$0xff]
    %v75 = vld [vmem:[#allocation2 + $0x110] sm:$0xff]
    %v76 = vld [vmem:[#allocation2 + $0x118] sm:$0xff]
    %v77 = vld [vmem:[#allocation2 + $0x120] sm:$0xff]
    %v78 = vld [vmem:[#allocation2 + $0x128] sm:$0xff]
    %v79 = vpack.c.bf16 %v42, %v41
    %v80 = vpack.c.bf16 %v44, %v43
    %v81 = vpack.c.bf16 %v46, %v45
    %v82 = vpack.c.bf16 %v48, %v47
    %v83 = vpack.c.bf16 %v50, %v49
    %v84 = vpack.c.bf16 %v52, %v51
    %v85 = vpack.c.bf16 %v54, %v53
    %v86 = vpack.c.bf16 %v56, %v55
    %v87 = vpack.c.bf16 %v58, %v57
    %v88 = vpack.c.bf16 %v60, %v59
    %v89 = vpack.c.bf16 %v62, %v61
    %v90 = vpack.c.bf16 %v64, %v63
    %v91 = vpack.c.bf16 %v66, %v65
    %v92 = vpack.c.bf16 %v68, %v67
    %v93 = vpack.c.bf16 %v70, %v69
    %v94 = vpack.c.bf16 %v72, %v71
    %v95 = vpack.c.bf16 %v74, %v73
    %v96 = vpack.c.bf16 %v76, %v75
    %v97 = vpack.c.bf16 %v78, %v77
    %v98 = vld [vmem:[%s1] sm:$0xf]
    %v99 = vld [vmem:[%s1 + $0x4] sm:$0xf]
    %v100 = vld [vmem:[%s1 + $0x8] sm:$0xf]
    %v101 = vld [vmem:[%s1 + $0xc] sm:$0xf]
    %v102 = vld [vmem:[%s1 + $0x10] sm:$0xf]
    %v103 = vld [vmem:[%s1 + $0x14] sm:$0xf]
    %v104 = vld [vmem:[%s1 + $0x18] sm:$0xf]
    %v105 = vld [vmem:[%s1 + $0x1c] sm:$0xf]
    %v106 = vld [vmem:[%s1 + $0x20] sm:$0xf]
    %v107 = vld [vmem:[%s1 + $0x24] sm:$0xf]
    %v108 = vld [vmem:[%s1 + $0x28] sm:$0xf]
    %v109 = vld [vmem:[%s1 + $0x2c] sm:$0xf]
    %v110 = vld [vmem:[%s1 + $0x30] sm:$0xf]
    %v111 = vld [vmem:[%s1 + $0x34] sm:$0xf]
    %v112 = vld [vmem:[%s1 + $0x38] sm:$0xf]
    %v113 = vld [vmem:[%s1 + $0x3c] sm:$0xf]
    %v114 = vld [vmem:[%s2] sm:$0x1]
    %v116 = vlaneseq
    %v117 = vshrl.u32 %v116, 7
    %v118 = vsub.s32 0, %v117
    %v119 = vrot.slane %v114, %v118
    %v137 = vunpack.c.l.b16 %v98
    %v138 = vunpack.c.l.b16 %v99
    %v139 = vunpack.c.l.b16 %v100
    %v140 = vunpack.c.l.b16 %v101
    %v141 = vunpack.c.l.b16 %v102
    %v142 = vunpack.c.l.b16 %v103
    %v143 = vunpack.c.l.b16 %v104
    %v144 = vunpack.c.l.b16 %v105
    %v145 = vunpack.c.l.b16 %v106
    %v146 = vunpack.c.l.b16 %v107
    %v147 = vunpack.c.l.b16 %v108
    %v148 = vunpack.c.l.b16 %v109
    %v149 = vunpack.c.l.b16 %v110
    %v150 = vunpack.c.l.b16 %v111
    %v151 = vunpack.c.l.b16 %v112
    %v152 = vunpack.c.l.b16 %v113
    %v153 = vpack.c.b16 %v138, %v137
    %v154 = vpack.c.b16 %v140, %v139
    %v155 = vpack.c.b16 %v142, %v141
    %v156 = vpack.c.b16 %v144, %v143
    %v157 = vpack.c.b16 %v146, %v145
    %v158 = vpack.c.b16 %v148, %v147
    %v159 = vpack.c.b16 %v150, %v149
    %v160 = vpack.c.b16 %v152, %v151
    %169 = vmatprep.subr.bf16.mxu0 0
    %170 = vmatpush1.bf16.msra.mxu0 %v153
    %171 = vmatprep.subr.bf16.mxu0 0
    %172 = vmatpush1.bf16.msra.mxu0 %v154
    %173 = vmatprep.subr.bf16.mxu0 0
    %174 = vmatpush1.bf16.msra.mxu0 %v155
    %175 = vmatprep.subr.bf16.mxu0 0
    %176 = vmatpush1.bf16.msra.mxu0 %v156
    %177 = vmatprep.subr.bf16.mxu0 0
    %178 = vmatpush1.bf16.msra.mxu0 %v157
    %179 = vmatprep.subr.bf16.mxu0 0
    %180 = vmatpush1.bf16.msra.mxu0 %v158
    %181 = vmatprep.subr.bf16.mxu0 0
    %182 = vmatpush1.bf16.msra.mxu0 %v159
    %183 = vmatprep.subr.bf16.mxu0 0
    %184 = vmatpush1.bf16.msra.mxu0 %v160
    %185 = vmatprep.subr.bf16.mxu0 0
    %186 = vmatpush1.bf16.msra.mxu0 0
    %187 = vmatprep.subr.bf16.mxu0 0
    %188 = vmatpush1.bf16.msra.mxu0 0
    %189 = vmatprep.subr.bf16.mxu0 0
    %190 = vmatpush1.bf16.msra.mxu0 0
    %191 = vmatprep.subr.bf16.mxu0 0
    %192 = vmatpush1.bf16.msra.mxu0 0
    %193 = vmatprep.subr.bf16.mxu0 0
    %194 = vmatpush1.bf16.msra.mxu0 0
    %195 = vmatprep.subr.bf16.mxu0 0
    %196 = vmatpush1.bf16.msra.mxu0 0
    %197 = vmatprep.subr.bf16.mxu0 0
    %198 = vmatpush1.bf16.msra.mxu0 0
    %199 = vmatprep.subr.bf16.mxu0 0
    %200 = vmatpush1.bf16.msra.mxu0 0
    %201 = vmatprep.mubr.bf16.mxu0 0
    %202 = vmatmul.mubr.bf16.gmra.mrb[0].mxu0 %v79
    %v203 = vpop.f32.mrb[0].mxu0
    %v204 = vadd.f32 %v119, %v203
    %v205 = vpop.f32.mrb[0].mxu0
    %v206 = vpop.f32.mrb[0].mxu0
    %v207 = vadd.f32 %v119, %v206
    %v208 = vpop.f32.mrb[0].mxu0
    %209 = vmatprep.mubr.bf16.mxu0 0
    %210 = vmatmul.mubr.bf16.gmra.mrb[0].mxu0 %v80
    %v211 = vpop.f32.mrb[0].mxu0
    %v212 = vadd.f32 %v119, %v211
    %v213 = vpop.f32.mrb[0].mxu0
    %v214 = vpop.f32.mrb[0].mxu0
    %v215 = vadd.f32 %v119, %v214
    %v216 = vpop.f32.mrb[0].mxu0
    %217 = vmatprep.mubr.bf16.mxu0 0
    %218 = vmatmul.mubr.bf16.gmra.mrb[0].mxu0 %v81
    %v219 = vpop.f32.mrb[0].mxu0
    %v220 = vadd.f32 %v119, %v219
    %v221 = vpop.f32.mrb[0].mxu0
    %v222 = vpop.f32.mrb[0].mxu0
    %v223 = vadd.f32 %v119, %v222
    %v224 = vpop.f32.mrb[0].mxu0
    %225 = vmatprep.mubr.bf16.mxu0 0
    %226 = vmatmul.mubr.bf16.gmra.mrb[0].mxu0 %v82
    %v227 = vpop.f32.mrb[0].mxu0
    %v228 = vadd.f32 %v119, %v227
    %v229 = vpop.f32.mrb[0].mxu0
    %v230 = vpop.f32.mrb[0].mxu0
    %v231 = vadd.f32 %v119, %v230
    %v232 = vpop.f32.mrb[0].mxu0
    %233 = vmatprep.mubr.bf16.mxu0 0
    %234 = vmatmul.mubr.bf16.gmra.mrb[0].mxu0 %v83
    %v235 = vpop.f32.mrb[0].mxu0
    %v236 = vadd.f32 %v119, %v235
    %v237 = vpop.f32.mrb[0].mxu0
    %v238 = vpop.f32.mrb[0].mxu0
    %v239 = vadd.f32 %v119, %v238
    %v240 = vpop.f32.mrb[0].mxu0
    %241 = vmatprep.mubr.bf16.mxu0 0
    %242 = vmatmul.mubr.bf16.gmra.mrb[0].mxu0 %v84
    %v243 = vpop.f32.mrb[0].mxu0
    %v244 = vadd.f32 %v119, %v243
    %v245 = vpop.f32.mrb[0].mxu0
    %v246 = vpop.f32.mrb[0].mxu0
    %v247 = vadd.f32 %v119, %v246
    %v248 = vpop.f32.mrb[0].mxu0
    %249 = vmatprep.mubr.bf16.mxu0 0
    %250 = vmatmul.mubr.bf16.gmra.mrb[0].mxu0 %v85
    %v251 = vpop.f32.mrb[0].mxu0
    %v252 = vadd.f32 %v119, %v251
    %v253 = vpop.f32.mrb[0].mxu0
    %v254 = vpop.f32.mrb[0].mxu0
    %v255 = vadd.f32 %v119, %v254
    %v256 = vpop.f32.mrb[0].mxu0
    %257 = vmatprep.mubr.bf16.mxu0 0
    %258 = vmatmul.mubr.bf16.gmra.mrb[0].mxu0 %v86
    %v259 = vpop.f32.mrb[0].mxu0
    %v260 = vadd.f32 %v119, %v259
    %v261 = vpop.f32.mrb[0].mxu0
    %v262 = vpop.f32.mrb[0].mxu0
    %v263 = vadd.f32 %v119, %v262
    %v264 = vpop.f32.mrb[0].mxu0
    %265 = vmatprep.mubr.bf16.mxu0 0
    %266 = vmatmul.mubr.bf16.gmra.mrb[0].mxu0 %v87
    %v267 = vpop.f32.mrb[0].mxu0
    %v268 = vadd.f32 %v119, %v267
    %v269 = vpop.f32.mrb[0].mxu0
    %v270 = vpop.f32.mrb[0].mxu0
    %v271 = vadd.f32 %v119, %v270
    %v272 = vpop.f32.mrb[0].mxu0
    %273 = vmatprep.mubr.bf16.mxu0 0
    %274 = vmatmul.mubr.bf16.gmra.mrb[0].mxu0 %v88
    %v275 = vpop.f32.mrb[0].mxu0
    %v276 = vadd.f32 %v119, %v275
    %v277 = vpop.f32.mrb[0].mxu0
    %v278 = vpop.f32.mrb[0].mxu0
    %v279 = vadd.f32 %v119, %v278
    %v280 = vpop.f32.mrb[0].mxu0
    %281 = vmatprep.mubr.bf16.mxu0 0
    %282 = vmatmul.mubr.bf16.gmra.mrb[0].mxu0 %v89
    %v283 = vpop.f32.mrb[0].mxu0
    %v284 = vadd.f32 %v119, %v283
    %v285 = vpop.f32.mrb[0].mxu0
    %v286 = vpop.f32.mrb[0].mxu0
    %v287 = vadd.f32 %v119, %v286
    %v288 = vpop.f32.mrb[0].mxu0
    %289 = vmatprep.mubr.bf16.mxu0 0
    %290 = vmatmul.mubr.bf16.gmra.mrb[0].mxu0 %v90
    %v291 = vpop.f32.mrb[0].mxu0
    %v292 = vadd.f32 %v119, %v291
    %v293 = vpop.f32.mrb[0].mxu0
    %v294 = vpop.f32.mrb[0].mxu0
    %v295 = vadd.f32 %v119, %v294
    %v296 = vpop.f32.mrb[0].mxu0
    %297 = vmatprep.mubr.bf16.mxu0 0
    %298 = vmatmul.mubr.bf16.gmra.mrb[0].mxu0 %v91
    %v299 = vpop.f32.mrb[0].mxu0
    %v300 = vadd.f32 %v119, %v299
    %v301 = vpop.f32.mrb[0].mxu0
    %v302 = vpop.f32.mrb[0].mxu0
    %v303 = vadd.f32 %v119, %v302
    %v304 = vpop.f32.mrb[0].mxu0
    %305 = vmatprep.mubr.bf16.mxu0 0
    %306 = vmatmul.mubr.bf16.gmra.mrb[0].mxu0 %v92
    %v307 = vpop.f32.mrb[0].mxu0
    %v308 = vadd.f32 %v119, %v307
    %v309 = vpop.f32.mrb[0].mxu0
    %v310 = vpop.f32.mrb[0].mxu0
    %v311 = vadd.f32 %v119, %v310
    %v312 = vpop.f32.mrb[0].mxu0
    %313 = vmatprep.mubr.bf16.mxu0 0
    %314 = vmatmul.mubr.bf16.gmra.mrb[0].mxu0 %v93
    %v315 = vpop.f32.mrb[0].mxu0
    %v316 = vadd.f32 %v119, %v315
    %v317 = vpop.f32.mrb[0].mxu0
    %v318 = vpop.f32.mrb[0].mxu0
    %v319 = vadd.f32 %v119, %v318
    %v320 = vpop.f32.mrb[0].mxu0
    %321 = vmatprep.mubr.bf16.mxu0 0
    %322 = vmatmul.mubr.bf16.gmra.mrb[0].mxu0 %v94
    %v323 = vpop.f32.mrb[0].mxu0
    %v324 = vadd.f32 %v119, %v323
    %v325 = vpop.f32.mrb[0].mxu0
    %v326 = vpop.f32.mrb[0].mxu0
    %v327 = vadd.f32 %v119, %v326
    %v328 = vpop.f32.mrb[0].mxu0
    %329 = vmatprep.mubr.bf16.mxu0 0
    %330 = vmatmul.mubr.bf16.gmra.mrb[0].mxu0 %v95
    %v331 = vpop.f32.mrb[0].mxu0
    %v332 = vadd.f32 %v119, %v331
    %v333 = vpop.f32.mrb[0].mxu0
    %v334 = vpop.f32.mrb[0].mxu0
    %v335 = vadd.f32 %v119, %v334
    %v336 = vpop.f32.mrb[0].mxu0
    %337 = vmatprep.mubr.bf16.mxu0 0
    %338 = vmatmul.mubr.bf16.gmra.mrb[0].mxu0 %v96
    %v339 = vpop.f32.mrb[0].mxu0
    %v340 = vadd.f32 %v119, %v339
    %v341 = vpop.f32.mrb[0].mxu0
    %v342 = vpop.f32.mrb[0].mxu0
    %v343 = vadd.f32 %v119, %v342
    %v344 = vpop.f32.mrb[0].mxu0
    %345 = vmatprep.mubr.bf16.mxu0 0
    %346 = vmatmul.mubr.bf16.gmra.mrb[0].mxu0 %v97
    %v347 = vpop.f32.mrb[0].mxu0
    %v348 = vadd.f32 %v119, %v347
    %v349 = vpop.f32.mrb[0].mxu0
    %v350 = vpop.f32.mrb[0].mxu0
    %v351 = vadd.f32 %v119, %v350
    %v352 = vpop.f32.mrb[0].mxu0
    %353 = vdwg.mxu0
    %v354 = vmax.f32 %v204, 0.0
    %v355 = vmax.f32 %v207, 0.0
    %v356 = vmax.f32 %v212, 0.0
    %v357 = vmax.f32 %v215, 0.0
    %v358 = vmax.f32 %v220, 0.0
    %v359 = vmax.f32 %v223, 0.0
    %v360 = vmax.f32 %v228, 0.0
    %v361 = vmax.f32 %v231, 0.0
    %v362 = vmax.f32 %v236, 0.0
    %v363 = vmax.f32 %v239, 0.0
    %v364 = vmax.f32 %v244, 0.0
    %v365 = vmax.f32 %v247, 0.0
    %v366 = vmax.f32 %v252, 0.0
    %v367 = vmax.f32 %v255, 0.0
    %v368 = vmax.f32 %v260, 0.0
    %v369 = vmax.f32 %v263, 0.0
    %v370 = vmax.f32 %v268, 0.0
    %v371 = vmax.f32 %v271, 0.0
    %v372 = vmax.f32 %v276, 0.0
    %v373 = vmax.f32 %v279, 0.0
    %v374 = vmax.f32 %v284, 0.0
    %v375 = vmax.f32 %v287, 0.0
    %v376 = vmax.f32 %v292, 0.0
    %v377 = vmax.f32 %v295, 0.0
    %v378 = vmax.f32 %v300, 0.0
    %v379 = vmax.f32 %v303, 0.0
    %v380 = vmax.f32 %v308, 0.0
    %v381 = vmax.f32 %v311, 0.0
    %v382 = vmax.f32 %v316, 0.0
    %v383 = vmax.f32 %v319, 0.0
    %v384 = vmax.f32 %v324, 0.0
    %v385 = vmax.f32 %v327, 0.0
    %v386 = vmax.f32 %v332, 0.0
    %v387 = vmax.f32 %v335, 0.0
    %v388 = vmax.f32 %v340, 0.0
    %v389 = vmax.f32 %v343, 0.0
    %v390 = vmax.f32 %v348, 0.0
    %v391 = vmax.f32 %v351, 0.0
    %v392 = vpack.c.bf16 %v355, %v354
    %v393 = vpack.c.bf16 %v357, %v356
    %v394 = vpack.c.bf16 %v359, %v358
    %v395 = vpack.c.bf16 %v361, %v360
    %v396 = vpack.c.bf16 %v363, %v362
    %v397 = vpack.c.bf16 %v365, %v364
    %v398 = vpack.c.bf16 %v367, %v366
    %v399 = vpack.c.bf16 %v369, %v368
    %v400 = vpack.c.bf16 %v371, %v370
    %v401 = vpack.c.bf16 %v373, %v372
    %v402 = vpack.c.bf16 %v375, %v374
    %v403 = vpack.c.bf16 %v377, %v376
    %v404 = vpack.c.bf16 %v379, %v378
    %v405 = vpack.c.bf16 %v381, %v380
    %v406 = vpack.c.bf16 %v383, %v382
    %v407 = vpack.c.bf16 %v385, %v384
    %v408 = vpack.c.bf16 %v387, %v386
    %v409 = vpack.c.bf16 %v389, %v388
    %v410 = vpack.c.bf16 %v391, %v390
    %v411 = vld [vmem:[%s3] sm:$0xf]
    %v412 = vld [vmem:[%s3 + $0x4] sm:$0xf]
    %v413 = vld [vmem:[%s3 + $0x8] sm:$0xf]
    %v414 = vld [vmem:[%s3 + $0xc] sm:$0xf]
    %v415 = vld [vmem:[%s3 + $0x10] sm:$0xf]
    %v416 = vld [vmem:[%s3 + $0x14] sm:$0xf]
    %v417 = vld [vmem:[%s3 + $0x18] sm:$0xf]
    %v418 = vld [vmem:[%s3 + $0x1c] sm:$0xf]
    %v419 = vld [vmem:[%s4] sm:$0x1]
    %v421 = vlaneseq
    %v422 = vshrl.u32 %v421, 7
    %v423 = vsub.s32 0, %v422
    %v424 = vrot.slane %v419, %v423
    %v434 = vunpack.c.l.b16 %v411
    %v435 = vunpack.c.l.b16 %v412
    %v436 = vunpack.c.l.b16 %v413
    %v437 = vunpack.c.l.b16 %v414
    %v438 = vunpack.c.l.b16 %v415
    %v439 = vunpack.c.l.b16 %v416
    %v440 = vunpack.c.l.b16 %v417
    %v441 = vunpack.c.l.b16 %v418
    %v442 = vpack.c.b16 %v435, %v434
    %v443 = vpack.c.b16 %v437, %v436
    %v444 = vpack.c.b16 %v439, %v438
    %v445 = vpack.c.b16 %v441, %v440
    %vm450 = vcmask 523264
    %v452 = vsel %vm450, %v392, 0
    %v455 = vsel %vm450, %v393, 0
    %v458 = vsel %vm450, %v394, 0
    %v461 = vsel %vm450, %v395, 0
    %v464 = vsel %vm450, %v396, 0
    %v467 = vsel %vm450, %v397, 0
    %v470 = vsel %vm450, %v398, 0
    %v473 = vsel %vm450, %v399, 0
    %v476 = vsel %vm450, %v400, 0
    %v479 = vsel %vm450, %v401, 0
    %v482 = vsel %vm450, %v402, 0
    %v485 = vsel %vm450, %v403, 0
    %v488 = vsel %vm450, %v404, 0
    %v491 = vsel %vm450, %v405, 0
    %v494 = vsel %vm450, %v406, 0
    %v497 = vsel %vm450, %v407, 0
    %v500 = vsel %vm450, %v408, 0
    %v503 = vsel %vm450, %v409, 0
    %v506 = vsel %vm450, %v410, 0
    %508 = vmatprep.subr.bf16.mxu0 0
    %509 = vmatpush1.bf16.msra.mxu0 %v442
    %510 = vmatprep.subr.bf16.mxu0 0
    %511 = vmatpush1.bf16.msra.mxu0 %v443
    %512 = vmatprep.subr.bf16.mxu0 0
    %513 = vmatpush1.bf16.msra.mxu0 %v444
    %514 = vmatprep.subr.bf16.mxu0 0
    %515 = vmatpush1.bf16.msra.mxu0 %v445
    %516 = vmatprep.subr.bf16.mxu0 0
    %517 = vmatpush1.bf16.msra.mxu0 0
    %518 = vmatprep.subr.bf16.mxu0 0
    %519 = vmatpush1.bf16.msra.mxu0 0
    %520 = vmatprep.subr.bf16.mxu0 0
    %521 = vmatpush1.bf16.msra.mxu0 0
    %522 = vmatprep.subr.bf16.mxu0 0
    %523 = vmatpush1.bf16.msra.mxu0 0
    %524 = vmatprep.subr.bf16.mxu0 0
    %525 = vmatpush1.bf16.msra.mxu0 0
    %526 = vmatprep.subr.bf16.mxu0 0
    %527 = vmatpush1.bf16.msra.mxu0 0
    %528 = vmatprep.subr.bf16.mxu0 0
    %529 = vmatpush1.bf16.msra.mxu0 0
    %530 = vmatprep.subr.bf16.mxu0 0
    %531 = vmatpush1.bf16.msra.mxu0 0
    %532 = vmatprep.subr.bf16.mxu0 0
    %533 = vmatpush1.bf16.msra.mxu0 0
    %534 = vmatprep.subr.bf16.mxu0 0
    %535 = vmatpush1.bf16.msra.mxu0 0
    %536 = vmatprep.subr.bf16.mxu0 0
    %537 = vmatpush1.bf16.msra.mxu0 0
    %538 = vmatprep.subr.bf16.mxu0 0
    %539 = vmatpush1.bf16.msra.mxu0 0
    %540 = vmatprep.mubr.bf16.mxu0 0
    %541 = vmatmul.mubr.bf16.gmra.mrb[0].mxu0 %v452
    %v542 = vpop.f32.mrb[0].mxu0
    %v543 = vadd.f32 %v424, %v542
    %v544 = vpop.f32.mrb[0].mxu0
    %v545 = vpop.f32.mrb[0].mxu0
    %v546 = vadd.f32 %v424, %v545
    %v547 = vpop.f32.mrb[0].mxu0
    %548 = vmatprep.mubr.bf16.mxu0 0
    %549 = vmatmul.mubr.bf16.gmra.mrb[0].mxu0 %v455
    %v550 = vpop.f32.mrb[0].mxu0
    %v551 = vadd.f32 %v424, %v550
    %v552 = vpop.f32.mrb[0].mxu0
    %v553 = vpop.f32.mrb[0].mxu0
    %v554 = vadd.f32 %v424, %v553
    %v555 = vpop.f32.mrb[0].mxu0
    %556 = vmatprep.mubr.bf16.mxu0 0
    %557 = vmatmul.mubr.bf16.gmra.mrb[0].mxu0 %v458
    %v558 = vpop.f32.mrb[0].mxu0
    %v559 = vadd.f32 %v424, %v558
    %v560 = vpop.f32.mrb[0].mxu0
    %v561 = vpop.f32.mrb[0].mxu0
    %v562 = vadd.f32 %v424, %v561
    %v563 = vpop.f32.mrb[0].mxu0
    %564 = vmatprep.mubr.bf16.mxu0 0
    %565 = vmatmul.mubr.bf16.gmra.mrb[0].mxu0 %v461
    %v566 = vpop.f32.mrb[0].mxu0
    %v567 = vadd.f32 %v424, %v566
    %v568 = vpop.f32.mrb[0].mxu0
    %v569 = vpop.f32.mrb[0].mxu0
    %v570 = vadd.f32 %v424, %v569
    %v571 = vpop.f32.mrb[0].mxu0
    %572 = vmatprep.mubr.bf16.mxu0 0
    %573 = vmatmul.mubr.bf16.gmra.mrb[0].mxu0 %v464
    %v574 = vpop.f32.mrb[0].mxu0
    %v575 = vadd.f32 %v424, %v574
    %v576 = vpop.f32.mrb[0].mxu0
    %v577 = vpop.f32.mrb[0].mxu0
    %v578 = vadd.f32 %v424, %v577
    %v579 = vpop.f32.mrb[0].mxu0
    %580 = vmatprep.mubr.bf16.mxu0 0
    %581 = vmatmul.mubr.bf16.gmra.mrb[0].mxu0 %v467
    %v582 = vpop.f32.mrb[0].mxu0
    %v583 = vadd.f32 %v424, %v582
    %v584 = vpop.f32.mrb[0].mxu0
    %v585 = vpop.f32.mrb[0].mxu0
    %v586 = vadd.f32 %v424, %v585
    %v587 = vpop.f32.mrb[0].mxu0
    %588 = vmatprep.mubr.bf16.mxu0 0
    %589 = vmatmul.mubr.bf16.gmra.mrb[0].mxu0 %v470
    %v590 = vpop.f32.mrb[0].mxu0
    %v591 = vadd.f32 %v424, %v590
    %v592 = vpop.f32.mrb[0].mxu0
    %v593 = vpop.f32.mrb[0].mxu0
    %v594 = vadd.f32 %v424, %v593
    %v595 = vpop.f32.mrb[0].mxu0
    %596 = vmatprep.mubr.bf16.mxu0 0
    %597 = vmatmul.mubr.bf16.gmra.mrb[0].mxu0 %v473
    %v598 = vpop.f32.mrb[0].mxu0
    %v599 = vadd.f32 %v424, %v598
    %v600 = vpop.f32.mrb[0].mxu0
    %v601 = vpop.f32.mrb[0].mxu0
    %v602 = vadd.f32 %v424, %v601
    %v603 = vpop.f32.mrb[0].mxu0
    %604 = vmatprep.mubr.bf16.mxu0 0
    %605 = vmatmul.mubr.bf16.gmra.mrb[0].mxu0 %v476
    %v606 = vpop.f32.mrb[0].mxu0
    %v607 = vadd.f32 %v424, %v606
    %v608 = vpop.f32.mrb[0].mxu0
    %v609 = vpop.f32.mrb[0].mxu0
    %v610 = vadd.f32 %v424, %v609
    %v611 = vpop.f32.mrb[0].mxu0
    %612 = vmatprep.mubr.bf16.mxu0 0
    %613 = vmatmul.mubr.bf16.gmra.mrb[0].mxu0 %v479
    %v614 = vpop.f32.mrb[0].mxu0
    %v615 = vadd.f32 %v424, %v614
    %v616 = vpop.f32.mrb[0].mxu0
    %v617 = vpop.f32.mrb[0].mxu0
    %v618 = vadd.f32 %v424, %v617
    %v619 = vpop.f32.mrb[0].mxu0
    %620 = vmatprep.mubr.bf16.mxu0 0
    %621 = vmatmul.mubr.bf16.gmra.mrb[0].mxu0 %v482
    %v622 = vpop.f32.mrb[0].mxu0
    %v623 = vadd.f32 %v424, %v622
    %v624 = vpop.f32.mrb[0].mxu0
    %v625 = vpop.f32.mrb[0].mxu0
    %v626 = vadd.f32 %v424, %v625
    %v627 = vpop.f32.mrb[0].mxu0
    %628 = vmatprep.mubr.bf16.mxu0 0
    %629 = vmatmul.mubr.bf16.gmra.mrb[0].mxu0 %v485
    %v630 = vpop.f32.mrb[0].mxu0
    %v631 = vadd.f32 %v424, %v630
    %v632 = vpop.f32.mrb[0].mxu0
    %v633 = vpop.f32.mrb[0].mxu0
    %v634 = vadd.f32 %v424, %v633
    %v635 = vpop.f32.mrb[0].mxu0
    %636 = vmatprep.mubr.bf16.mxu0 0
    %637 = vmatmul.mubr.bf16.gmra.mrb[0].mxu0 %v488
    %v638 = vpop.f32.mrb[0].mxu0
    %v639 = vadd.f32 %v424, %v638
    %v640 = vpop.f32.mrb[0].mxu0
    %v641 = vpop.f32.mrb[0].mxu0
    %v642 = vadd.f32 %v424, %v641
    %v643 = vpop.f32.mrb[0].mxu0
    %644 = vmatprep.mubr.bf16.mxu0 0
    %645 = vmatmul.mubr.bf16.gmra.mrb[0].mxu0 %v491
    %v646 = vpop.f32.mrb[0].mxu0
    %v647 = vadd.f32 %v424, %v646
    %v648 = vpop.f32.mrb[0].mxu0
    %v649 = vpop.f32.mrb[0].mxu0
    %v650 = vadd.f32 %v424, %v649
    %v651 = vpop.f32.mrb[0].mxu0
    %652 = vmatprep.mubr.bf16.mxu0 0
    %653 = vmatmul.mubr.bf16.gmra.mrb[0].mxu0 %v494
    %v654 = vpop.f32.mrb[0].mxu0
    %v655 = vadd.f32 %v424, %v654
    %v656 = vpop.f32.mrb[0].mxu0
    %v657 = vpop.f32.mrb[0].mxu0
    %v658 = vadd.f32 %v424, %v657
    %v659 = vpop.f32.mrb[0].mxu0
    %660 = vmatprep.mubr.bf16.mxu0 0
    %661 = vmatmul.mubr.bf16.gmra.mrb[0].mxu0 %v497
    %v662 = vpop.f32.mrb[0].mxu0
    %v663 = vadd.f32 %v424, %v662
    %v664 = vpop.f32.mrb[0].mxu0
    %v665 = vpop.f32.mrb[0].mxu0
    %v666 = vadd.f32 %v424, %v665
    %v667 = vpop.f32.mrb[0].mxu0
    %668 = vmatprep.mubr.bf16.mxu0 0
    %669 = vmatmul.mubr.bf16.gmra.mrb[0].mxu0 %v500
    %v670 = vpop.f32.mrb[0].mxu0
    %v671 = vadd.f32 %v424, %v670
    %v672 = vpop.f32.mrb[0].mxu0
    %v673 = vpop.f32.mrb[0].mxu0
    %v674 = vadd.f32 %v424, %v673
    %v675 = vpop.f32.mrb[0].mxu0
    %676 = vmatprep.mubr.bf16.mxu0 0
    %677 = vmatmul.mubr.bf16.gmra.mrb[0].mxu0 %v503
    %v678 = vpop.f32.mrb[0].mxu0
    %v679 = vadd.f32 %v424, %v678
    %v680 = vpop.f32.mrb[0].mxu0
    %v681 = vpop.f32.mrb[0].mxu0
    %v682 = vadd.f32 %v424, %v681
    %v683 = vpop.f32.mrb[0].mxu0
    %684 = vmatprep.mubr.bf16.mxu0 0
    %685 = vmatmul.mubr.bf16.gmra.mrb[0].mxu0 %v506
    %v686 = vpop.f32.mrb[0].mxu0
    %v687 = vadd.f32 %v424, %v686
    %v688 = vpop.f32.mrb[0].mxu0
    %v689 = vpop.f32.mrb[0].mxu0
    %v690 = vadd.f32 %v424, %v689
    %v691 = vpop.f32.mrb[0].mxu0
    %692 = vdwg.mxu0
    %v693 = vmax.f32 %v543, 0.0
    %v694 = vmax.f32 %v546, 0.0
    %v695 = vmax.f32 %v551, 0.0
    %v696 = vmax.f32 %v554, 0.0
    %v697 = vmax.f32 %v559, 0.0
    %v698 = vmax.f32 %v562, 0.0
    %v699 = vmax.f32 %v567, 0.0
    %v700 = vmax.f32 %v570, 0.0
    %v701 = vmax.f32 %v575, 0.0
    %v702 = vmax.f32 %v578, 0.0
    %v703 = vmax.f32 %v583, 0.0
    %v704 = vmax.f32 %v586, 0.0
    %v705 = vmax.f32 %v591, 0.0
    %v706 = vmax.f32 %v594, 0.0
    %v707 = vmax.f32 %v599, 0.0
    %v708 = vmax.f32 %v602, 0.0
    %v709 = vmax.f32 %v607, 0.0
    %v710 = vmax.f32 %v610, 0.0
    %v711 = vmax.f32 %v615, 0.0
    %v712 = vmax.f32 %v618, 0.0
    %v713 = vmax.f32 %v623, 0.0
    %v714 = vmax.f32 %v626, 0.0
    %v715 = vmax.f32 %v631, 0.0
    %v716 = vmax.f32 %v634, 0.0
    %v717 = vmax.f32 %v639, 0.0
    %v718 = vmax.f32 %v642, 0.0
    %v719 = vmax.f32 %v647, 0.0
    %v720 = vmax.f32 %v650, 0.0
    %v721 = vmax.f32 %v655, 0.0
    %v722 = vmax.f32 %v658, 0.0
    %v723 = vmax.f32 %v663, 0.0
    %v724 = vmax.f32 %v666, 0.0
    %v725 = vmax.f32 %v671, 0.0
    %v726 = vmax.f32 %v674, 0.0
    %v727 = vmax.f32 %v679, 0.0
    %v728 = vmax.f32 %v682, 0.0
    %v729 = vmax.f32 %v687, 0.0
    %v730 = vmax.f32 %v690, 0.0
    %v731 = vpack.c.bf16 %v694, %v693
    %v732 = vpack.c.bf16 %v696, %v695
    %v733 = vpack.c.bf16 %v698, %v697
    %v734 = vpack.c.bf16 %v700, %v699
    %v735 = vpack.c.bf16 %v702, %v701
    %v736 = vpack.c.bf16 %v704, %v703
    %v737 = vpack.c.bf16 %v706, %v705
    %v738 = vpack.c.bf16 %v708, %v707
    %v739 = vpack.c.bf16 %v710, %v709
    %v740 = vpack.c.bf16 %v712, %v711
    %v741 = vpack.c.bf16 %v714, %v713
    %v742 = vpack.c.bf16 %v716, %v715
    %v743 = vpack.c.bf16 %v718, %v717
    %v744 = vpack.c.bf16 %v720, %v719
    %v745 = vpack.c.bf16 %v722, %v721
    %v746 = vpack.c.bf16 %v724, %v723
    %v747 = vpack.c.bf16 %v726, %v725
    %v748 = vpack.c.bf16 %v728, %v727
    %v749 = vpack.c.bf16 %v730, %v729
    %v750 = vld [vmem:[%s5] sm:$0xf]
    %v751 = vld [vmem:[%s5 + $0x4] sm:$0xf]
    %v752 = vld [vmem:[%s5 + $0x8] sm:$0xf]
    %v753 = vld [vmem:[%s5 + $0xc] sm:$0xf]
    %v754 = vld [vmem:[%s6] sm:$0x1]
    %v756 = vlaneseq
    %v757 = vshrl.u32 %v756, 7
    %v758 = vsub.s32 0, %v757
    %v759 = vrot.slane %v754, %v758
    %v765 = vunpack.c.l.b16 %v750
    %v766 = vunpack.c.l.b16 %v751
    %v767 = vunpack.c.l.b16 %v752
    %v768 = vunpack.c.l.b16 %v753
    %v769 = vpack.c.b16 %v766, %v765
    %v770 = vpack.c.b16 %v768, %v767
    %vm773 = vcmask 261120
    %v775 = vsel %vm773, %v731, 0
    %v778 = vsel %vm773, %v732, 0
    %v781 = vsel %vm773, %v733, 0
    %v784 = vsel %vm773, %v734, 0
    %v787 = vsel %vm773, %v735, 0
    %v790 = vsel %vm773, %v736, 0
    %v793 = vsel %vm773, %v737, 0
    %v796 = vsel %vm773, %v738, 0
    %v799 = vsel %vm773, %v739, 0
    %v802 = vsel %vm773, %v740, 0
    %v805 = vsel %vm773, %v741, 0
    %v808 = vsel %vm773, %v742, 0
    %v811 = vsel %vm773, %v743, 0
    %v814 = vsel %vm773, %v744, 0
    %v817 = vsel %vm773, %v745, 0
    %v820 = vsel %vm773, %v746, 0
    %v823 = vsel %vm773, %v747, 0
    %v826 = vsel %vm773, %v748, 0
    %v829 = vsel %vm773, %v749, 0
    %831 = vmatprep.subr.bf16.mxu0 0
    %832 = vmatpush1.bf16.msra.mxu0 %v769
    %833 = vmatprep.subr.bf16.mxu0 0
    %834 = vmatpush1.bf16.msra.mxu0 %v770
    %835 = vmatprep.subr.bf16.mxu0 0
    %836 = vmatpush1.bf16.msra.mxu0 0
    %837 = vmatprep.subr.bf16.mxu0 0
    %838 = vmatpush1.bf16.msra.mxu0 0
    %839 = vmatprep.subr.bf16.mxu0 0
    %840 = vmatpush1.bf16.msra.mxu0 0
    %841 = vmatprep.subr.bf16.mxu0 0
    %842 = vmatpush1.bf16.msra.mxu0 0
    %843 = vmatprep.subr.bf16.mxu0 0
    %844 = vmatpush1.bf16.msra.mxu0 0
    %845 = vmatprep.subr.bf16.mxu0 0
    %846 = vmatpush1.bf16.msra.mxu0 0
    %847 = vmatprep.subr.bf16.mxu0 0
    %848 = vmatpush1.bf16.msra.mxu0 0
    %849 = vmatprep.subr.bf16.mxu0 0
    %850 = vmatpush1.bf16.msra.mxu0 0
    %851 = vmatprep.subr.bf16.mxu0 0
    %852 = vmatpush1.bf16.msra.mxu0 0
    %853 = vmatprep.subr.bf16.mxu0 0
    %854 = vmatpush1.bf16.msra.mxu0 0
    %855 = vmatprep.subr.bf16.mxu0 0
    %856 = vmatpush1.bf16.msra.mxu0 0
    %857 = vmatprep.subr.bf16.mxu0 0
    %858 = vmatpush1.bf16.msra.mxu0 0
    %859 = vmatprep.subr.bf16.mxu0 0
    %860 = vmatpush1.bf16.msra.mxu0 0
    %861 = vmatprep.subr.bf16.mxu0 0
    %862 = vmatpush1.bf16.msra.mxu0 0
    %863 = vmatprep.mubr.bf16.mxu0 0
    %864 = vmatmul.mubr.bf16.gmra.mrb[0].mxu0 %v775
    %v865 = vpop.f32.mrb[0].mxu0
    %v866 = vadd.f32 %v759, %v865
    %v867 = vpop.f32.mrb[0].mxu0
    %v868 = vpop.f32.mrb[0].mxu0
    %v869 = vadd.f32 %v759, %v868
    %v870 = vpop.f32.mrb[0].mxu0
    %871 = vmatprep.mubr.bf16.mxu0 0
    %872 = vmatmul.mubr.bf16.gmra.mrb[0].mxu0 %v778
    %v873 = vpop.f32.mrb[0].mxu0
    %v874 = vadd.f32 %v759, %v873
    %v875 = vpop.f32.mrb[0].mxu0
    %v876 = vpop.f32.mrb[0].mxu0
    %v877 = vadd.f32 %v759, %v876
    %v878 = vpop.f32.mrb[0].mxu0
    %879 = vmatprep.mubr.bf16.mxu0 0
    %880 = vmatmul.mubr.bf16.gmra.mrb[0].mxu0 %v781
    %v881 = vpop.f32.mrb[0].mxu0
    %v882 = vadd.f32 %v759, %v881
    %v883 = vpop.f32.mrb[0].mxu0
    %v884 = vpop.f32.mrb[0].mxu0
    %v885 = vadd.f32 %v759, %v884
    %v886 = vpop.f32.mrb[0].mxu0
    %887 = vmatprep.mubr.bf16.mxu0 0
    %888 = vmatmul.mubr.bf16.gmra.mrb[0].mxu0 %v784
    %v889 = vpop.f32.mrb[0].mxu0
    %v890 = vadd.f32 %v759, %v889
    %v891 = vpop.f32.mrb[0].mxu0
    %v892 = vpop.f32.mrb[0].mxu0
    %v893 = vadd.f32 %v759, %v892
    %v894 = vpop.f32.mrb[0].mxu0
    %895 = vmatprep.mubr.bf16.mxu0 0
    %896 = vmatmul.mubr.bf16.gmra.mrb[0].mxu0 %v787
    %v897 = vpop.f32.mrb[0].mxu0
    %v898 = vadd.f32 %v759, %v897
    %v899 = vpop.f32.mrb[0].mxu0
    %v900 = vpop.f32.mrb[0].mxu0
    %v901 = vadd.f32 %v759, %v900
    %v902 = vpop.f32.mrb[0].mxu0
    %903 = vmatprep.mubr.bf16.mxu0 0
    %904 = vmatmul.mubr.bf16.gmra.mrb[0].mxu0 %v790
    %v905 = vpop.f32.mrb[0].mxu0
    %v906 = vadd.f32 %v759, %v905
    %v907 = vpop.f32.mrb[0].mxu0
    %v908 = vpop.f32.mrb[0].mxu0
    %v909 = vadd.f32 %v759, %v908
    %v910 = vpop.f32.mrb[0].mxu0
    %911 = vmatprep.mubr.bf16.mxu0 0
    %912 = vmatmul.mubr.bf16.gmra.mrb[0].mxu0 %v793
    %v913 = vpop.f32.mrb[0].mxu0
    %v914 = vadd.f32 %v759, %v913
    %v915 = vpop.f32.mrb[0].mxu0
    %v916 = vpop.f32.mrb[0].mxu0
    %v917 = vadd.f32 %v759, %v916
    %v918 = vpop.f32.mrb[0].mxu0
    %919 = vmatprep.mubr.bf16.mxu0 0
    %920 = vmatmul.mubr.bf16.gmra.mrb[0].mxu0 %v796
    %v921 = vpop.f32.mrb[0].mxu0
    %v922 = vadd.f32 %v759, %v921
    %v923 = vpop.f32.mrb[0].mxu0
    %v924 = vpop.f32.mrb[0].mxu0
    %v925 = vadd.f32 %v759, %v924
    %v926 = vpop.f32.mrb[0].mxu0
    %927 = vmatprep.mubr.bf16.mxu0 0
    %928 = vmatmul.mubr.bf16.gmra.mrb[0].mxu0 %v799
    %v929 = vpop.f32.mrb[0].mxu0
    %v930 = vadd.f32 %v759, %v929
    %v931 = vpop.f32.mrb[0].mxu0
    %v932 = vpop.f32.mrb[0].mxu0
    %v933 = vadd.f32 %v759, %v932
    %v934 = vpop.f32.mrb[0].mxu0
    %935 = vmatprep.mubr.bf16.mxu0 0
    %936 = vmatmul.mubr.bf16.gmra.mrb[0].mxu0 %v802
    %v937 = vpop.f32.mrb[0].mxu0
    %v938 = vadd.f32 %v759, %v937
    %v939 = vpop.f32.mrb[0].mxu0
    %v940 = vpop.f32.mrb[0].mxu0
    %v941 = vadd.f32 %v759, %v940
    %v942 = vpop.f32.mrb[0].mxu0
    %943 = vmatprep.mubr.bf16.mxu0 0
    %944 = vmatmul.mubr.bf16.gmra.mrb[0].mxu0 %v805
    %v945 = vpop.f32.mrb[0].mxu0
    %v946 = vadd.f32 %v759, %v945
    %v947 = vpop.f32.mrb[0].mxu0
    %v948 = vpop.f32.mrb[0].mxu0
    %v949 = vadd.f32 %v759, %v948
    %v950 = vpop.f32.mrb[0].mxu0
    %951 = vmatprep.mubr.bf16.mxu0 0
    %952 = vmatmul.mubr.bf16.gmra.mrb[0].mxu0 %v808
    %v953 = vpop.f32.mrb[0].mxu0
    %v954 = vadd.f32 %v759, %v953
    %v955 = vpop.f32.mrb[0].mxu0
    %v956 = vpop.f32.mrb[0].mxu0
    %v957 = vadd.f32 %v759, %v956
    %v958 = vpop.f32.mrb[0].mxu0
    %959 = vmatprep.mubr.bf16.mxu0 0
    %960 = vmatmul.mubr.bf16.gmra.mrb[0].mxu0 %v811
    %v961 = vpop.f32.mrb[0].mxu0
    %v962 = vadd.f32 %v759, %v961
    %v963 = vpop.f32.mrb[0].mxu0
    %v964 = vpop.f32.mrb[0].mxu0
    %v965 = vadd.f32 %v759, %v964
    %v966 = vpop.f32.mrb[0].mxu0
    %967 = vmatprep.mubr.bf16.mxu0 0
    %968 = vmatmul.mubr.bf16.gmra.mrb[0].mxu0 %v814
    %v969 = vpop.f32.mrb[0].mxu0
    %v970 = vadd.f32 %v759, %v969
    %v971 = vpop.f32.mrb[0].mxu0
    %v972 = vpop.f32.mrb[0].mxu0
    %v973 = vadd.f32 %v759, %v972
    %v974 = vpop.f32.mrb[0].mxu0
    %975 = vmatprep.mubr.bf16.mxu0 0
    %976 = vmatmul.mubr.bf16.gmra.mrb[0].mxu0 %v817
    %v977 = vpop.f32.mrb[0].mxu0
    %v978 = vadd.f32 %v759, %v977
    %v979 = vpop.f32.mrb[0].mxu0
    %v980 = vpop.f32.mrb[0].mxu0
    %v981 = vadd.f32 %v759, %v980
    %v982 = vpop.f32.mrb[0].mxu0
    %983 = vmatprep.mubr.bf16.mxu0 0
    %984 = vmatmul.mubr.bf16.gmra.mrb[0].mxu0 %v820
    %v985 = vpop.f32.mrb[0].mxu0
    %v986 = vadd.f32 %v759, %v985
    %v987 = vpop.f32.mrb[0].mxu0
    %v988 = vpop.f32.mrb[0].mxu0
    %v989 = vadd.f32 %v759, %v988
    %v990 = vpop.f32.mrb[0].mxu0
    %991 = vmatprep.mubr.bf16.mxu0 0
    %992 = vmatmul.mubr.bf16.gmra.mrb[0].mxu0 %v823
    %v993 = vpop.f32.mrb[0].mxu0
    %v994 = vadd.f32 %v759, %v993
    %v995 = vpop.f32.mrb[0].mxu0
    %v996 = vpop.f32.mrb[0].mxu0
    %v997 = vadd.f32 %v759, %v996
    %v998 = vpop.f32.mrb[0].mxu0
    %999 = vmatprep.mubr.bf16.mxu0 0
    %1000 = vmatmul.mubr.bf16.gmra.mrb[0].mxu0 %v826
    %v1001 = vpop.f32.mrb[0].mxu0
    %v1002 = vadd.f32 %v759, %v1001
    %v1003 = vpop.f32.mrb[0].mxu0
    %v1004 = vpop.f32.mrb[0].mxu0
    %v1005 = vadd.f32 %v759, %v1004
    %v1006 = vpop.f32.mrb[0].mxu0
    %1007 = vmatprep.mubr.bf16.mxu0 0
    %1008 = vmatmul.mubr.bf16.gmra.mrb[0].mxu0 %v829
    %v1009 = vpop.f32.mrb[0].mxu0
    %v1010 = vadd.f32 %v759, %v1009
    %v1011 = vpop.f32.mrb[0].mxu0
    %v1012 = vpop.f32.mrb[0].mxu0
    %v1013 = vadd.f32 %v759, %v1012
    %v1014 = vpop.f32.mrb[0].mxu0
    %1015 = vdwg.mxu0
    %vm1016 = vcmask 130048
    %1017 = vst.msk [vmem:[%s7] sm:$0xff] %vm1016, %v866
    %1018 = vst.msk [vmem:[%s7 + $0x8] sm:$0xff] %vm1016, %v869
    %1019 = vst.msk [vmem:[%s7 + $0x10] sm:$0xff] %vm1016, %v874
    %1020 = vst.msk [vmem:[%s7 + $0x18] sm:$0xff] %vm1016, %v877
    %1021 = vst.msk [vmem:[%s7 + $0x20] sm:$0xff] %vm1016, %v882
    %1022 = vst.msk [vmem:[%s7 + $0x28] sm:$0xff] %vm1016, %v885
    %1023 = vst.msk [vmem:[%s7 + $0x30] sm:$0xff] %vm1016, %v890
    %1024 = vst.msk [vmem:[%s7 + $0x38] sm:$0xff] %vm1016, %v893
    %1025 = vst.msk [vmem:[%s7 + $0x40] sm:$0xff] %vm1016, %v898
    %1026 = vst.msk [vmem:[%s7 + $0x48] sm:$0xff] %vm1016, %v901
    %1027 = vst.msk [vmem:[%s7 + $0x50] sm:$0xff] %vm1016, %v906
    %1028 = vst.msk [vmem:[%s7 + $0x58] sm:$0xff] %vm1016, %v909
    %1029 = vst.msk [vmem:[%s7 + $0x60] sm:$0xff] %vm1016, %v914
    %1030 = vst.msk [vmem:[%s7 + $0x68] sm:$0xff] %vm1016, %v917
    %1031 = vst.msk [vmem:[%s7 + $0x70] sm:$0xff] %vm1016, %v922
    %1032 = vst.msk [vmem:[%s7 + $0x78] sm:$0xff] %vm1016, %v925
    %1033 = vst.msk [vmem:[%s7 + $0x80] sm:$0xff] %vm1016, %v930
    %1034 = vst.msk [vmem:[%s7 + $0x88] sm:$0xff] %vm1016, %v933
    %1035 = vst.msk [vmem:[%s7 + $0x90] sm:$0xff] %vm1016, %v938
    %1036 = vst.msk [vmem:[%s7 + $0x98] sm:$0xff] %vm1016, %v941
    %1037 = vst.msk [vmem:[%s7 + $0xa0] sm:$0xff] %vm1016, %v946
    %1038 = vst.msk [vmem:[%s7 + $0xa8] sm:$0xff] %vm1016, %v949
    %1039 = vst.msk [vmem:[%s7 + $0xb0] sm:$0xff] %vm1016, %v954
    %1040 = vst.msk [vmem:[%s7 + $0xb8] sm:$0xff] %vm1016, %v957
    %1041 = vst.msk [vmem:[%s7 + $0xc0] sm:$0xff] %vm1016, %v962
    %1042 = vst.msk [vmem:[%s7 + $0xc8] sm:$0xff] %vm1016, %v965
    %1043 = vst.msk [vmem:[%s7 + $0xd0] sm:$0xff] %vm1016, %v970
    %1044 = vst.msk [vmem:[%s7 + $0xd8] sm:$0xff] %vm1016, %v973
    %1045 = vst.msk [vmem:[%s7 + $0xe0] sm:$0xff] %vm1016, %v978
    %1046 = vst.msk [vmem:[%s7 + $0xe8] sm:$0xff] %vm1016, %v981
    %1047 = vst.msk [vmem:[%s7 + $0xf0] sm:$0xff] %vm1016, %v986
    %1048 = vst.msk [vmem:[%s7 + $0xf8] sm:$0xff] %vm1016, %v989
    %1049 = vst.msk [vmem:[%s7 + $0x100] sm:$0xff] %vm1016, %v994
    %1050 = vst.msk [vmem:[%s7 + $0x108] sm:$0xff] %vm1016, %v997
    %1051 = vst.msk [vmem:[%s7 + $0x110] sm:$0xff] %vm1016, %v1002
    %1052 = vst.msk [vmem:[%s7 + $0x118] sm:$0xff] %vm1016, %v1005
    %1053 = vst.msk [vmem:[%s7 + $0x120] sm:$0xff] %vm1016, %v1010
    %1054 = vst.msk [vmem:[%s7 + $0x128] sm:$0xff] %vm1016, %v1013
    // Predicated region
    $region34: #{classifier_forward.1} parent=1 // pred_check
      _
    $region35: #{classifier_forward.1} parent=1 // pred_check_branch
      %1056 = sbr.rel (0) target = $region37
    $region36: #{classifier_forward.1} parent=1 // pred_region
      _
    $region37: #{classifier_forward.1} parent=1 // pred_fallthru
      _
    // Predicated region
    $region38: #{classifier_forward.1} parent=1 // pred_check
      _
    $region39: #{classifier_forward.1} parent=1 // pred_check_branch
      %1058 = sbr.rel (0) target = $region41
    $region40: #{classifier_forward.1} parent=1 // pred_region
      _
    $region41: #{classifier_forward.1} parent=1 // pred_fallthru
      _
    %1059 = vsyncpa [#allocation3], 1

</llo_original>
